<compile_context>
chip_gen: v6e
topology: v6e:2x2x1
jax: 0.10.0
libtpu: 0.0.40
codegen_flags: <defaults>
</compile_context>

<pallas_src>
import functools
import math

import jax
import jax.numpy as jnp
from jax.experimental import pallas as pl
from jax.experimental.pallas import tpu as pltpu

_INV_SQRT2 = 1.0 / math.sqrt(2.0)


def _gelu(x, approximate=False):
    if approximate:
        # tanh approximation routes through the EUP (its own VLIW slot, idle here).
        return jax.nn.gelu(x, approximate=True)
    # PyTorch nn.GELU() default: exact erf-based GELU (VALU polynomial).
    return 0.5 * x * (1.0 + jax.lax.erf(x * _INV_SQRT2))


def _mlp_kernel(x_ref, w1_ref, b1_ref, w2_ref, b2_ref, o_ref, *scratch,
                compute_dtype, approximate_gelu):
    """One (tm, D) row tile; the hidden dim H is streamed over grid axis 1."""
    # f32 outputs accumulate in-place into the resident output block (no scratch).
    acc_ref = scratch[0] if scratch else o_ref
    h_idx = pl.program_id(1)

    @pl.when(h_idx == 0)
    def _():
        acc_ref[...] = jnp.zeros_like(acc_ref)

    # fc1 on one (tm, th) hidden slice; f32 accumulation on the MXU.
    h = jnp.dot(x_ref[...], w1_ref[...], preferred_element_type=jnp.float32)
    h = _gelu(h + b1_ref[...], approximate=approximate_gelu)
    # Dropout(p=0) is the identity -> no-op.
    # fc2 partial product for this hidden slice, accumulated in f32.
    acc_ref[...] += jnp.dot(h.astype(compute_dtype), w2_ref[...],
                            preferred_element_type=jnp.float32)

    @pl.when(h_idx == pl.num_programs(1) - 1)
    def _():
        if scratch:
            o_ref[...] = (acc_ref[...] + b2_ref[...]).astype(o_ref.dtype)
        else:
            o_ref[...] += b2_ref[...]


def _round_up(n, m):
    return ((n + m - 1) // m) * m


def _physical_vmem_bytes():
    try:
        info = pltpu.get_tpu_info()
        for name in ("vmem_capacity_bytes", "vmem_bytes", "vmem_size_bytes"):
            v = getattr(info, name, None)
            if v:
                return int(v)
    except Exception:
        pass
    return 64 * 1024 * 1024   # conservative fallback: fits every TPU generation


def _vmem_need_bytes(tm, th, d, w_isz, x_isz, out_isz, use_scratch):
    need = 2 * (tm * d * x_isz          # x row tile (double-buffered)
                + d * th * w_isz        # w1 slice
                + th * d * w_isz        # w2 slice
                + th * 4 + d * 4        # f32 bias slices
                + tm * d * out_isz)     # output row tile
    if use_scratch:
        need += tm * d * 4              # f32 accumulator (single buffer)
    return need


def mlp_pallas(x, w1, b1, w2, b2, *, tm=512, th=512,
               compute_dtype=jnp.bfloat16, approximate_gelu=True,
               vmem_limit_bytes=None, weight_buffer_count=None):
    """x: (B, S, D).  w1: (D, H), b1: (H,), w2: (H, D), b2: (D,).  Returns (B, S, D)."""
    B, S, D = x.shape
    H = w1.shape[1]
    out_dtype = x.dtype
    compute_dtype = jnp.dtype(compute_dtype)
    x_isz = w_isz = compute_dtype.itemsize
    out_isz = jnp.dtype(out_dtype).itemsize
    use_scratch = jnp.dtype(out_dtype) != jnp.float32   # f32 outputs accumulate in-place

    M = B * S
    x2d = x.reshape(M, D)

    # Sublane packing: bf16 packs 16 rows per vreg, f32 packs 8.
    row_align = 16 if compute_dtype.itemsize < 4 else 8

    # Row tile as large as possible (fewer weight re-streams per token); hidden tile
    # lane-aligned to 128.
    tm_eff = min(tm, _round_up(M, row_align))
    th_eff = min(th, _round_up(H, 128))

    # Keep the double-buffered working set inside a per-generation VMEM budget
    # (v7x: 64 MiB/TC -> ~48 MiB budget; v5e/v6e: 128 MiB -> ~96 MiB budget).
    budget = (3 * _physical_vmem_bytes()) // 4
    while (_vmem_need_bytes(tm_eff, th_eff, D, w_isz, x_isz, out_isz, use_scratch)
           > budget and th_eff > 128):
        th_eff = max(128, _round_up(th_eff // 2, 128))
    while (_vmem_need_bytes(tm_eff, th_eff, D, w_isz, x_isz, out_isz, use_scratch)
           > budget and tm_eff > row_align):
        tm_eff = max(row_align, _round_up(tm_eff // 2, row_align))
    if vmem_limit_bytes is None:
        vmem_limit_bytes = budget

    # Megacore: v7x has 2 TensorCores sharding the "parallel" row axis -- make sure it
    # has at least 2 tiles whenever the row count allows a split.
    if _round_up(M, tm_eff) // tm_eff < 2 and tm_eff >= 2 * row_align:
        tm_eff = _round_up(tm_eff // 2, row_align)

    M_pad = _round_up(M, tm_eff)
    H_pad = _round_up(H, th_eff)

    if M_pad != M:
        x2d = jnp.pad(x2d, ((0, M_pad - M), (0, 0)))
    if H_pad != H:
        # Zero-padded hidden units contribute exactly 0: gelu(0 + 0) = 0 and the
        # corresponding w2 rows are zero (b1 must stay zero-padded).
        w1 = jnp.pad(w1, ((0, 0), (0, H_pad - H)))
        b1 = jnp.pad(b1, ((0, H_pad - H),))
        w2 = jnp.pad(w2, ((0, H_pad - H), (0, 0)))

    # bf16 (default) MXU operands halve weight DMA and hit the fast MXU path on all
    # generations; biases and accumulation stay f32.
    x2d = x2d.astype(compute_dtype)
    w1 = w1.astype(compute_dtype)
    w2 = w2.astype(compute_dtype)
    b1_2d = b1.reshape(1, H_pad).astype(jnp.float32)
    b2_2d = b2.reshape(1, D).astype(jnp.float32)

    grid_m = M_pad // tm_eff
    grid_h = H_pad // th_eff
    grid = (grid_m, grid_h)

    # True HBM roofline: weights are re-streamed once per row tile.
    cost = pl.CostEstimate(
        flops=4 * M_pad * D * H_pad,                 # two (M,D,H) matmuls
        transcendentals=M_pad * H_pad,               # erf / tanh in GELU
        bytes_accessed=(M_pad * D * x_isz                      # x read
                        + grid_m * 2 * D * H_pad * w_isz       # w1 + w2 per row tile
                        + (H_pad + D) * 4                      # biases
                        + M_pad * D * out_isz),                # output write
    )

    w_pipeline = {}
    if weight_buffer_count is not None and weight_buffer_count > 2:
        # Optional (v5e, where VMEM is plentiful): deeper weight buffering smooths
        # bursty HBM traffic at h-step boundaries.
        w_pipeline = dict(pipeline_mode=pl.Buffered(weight_buffer_count))
    # TODO(synk): opt-in fp8 weights (+ per-tile scales) for v7x would halve weight DMA again.

    in_specs = [
        pl.BlockSpec((tm_eff, D), lambda i, h: (i, 0)),                 # x rows (held over h)
        pl.BlockSpec((D, th_eff), lambda i, h: (0, h), **w_pipeline),   # w1 slice (streamed)
        pl.BlockSpec((1, th_eff), lambda i, h: (0, h)),                 # b1 slice
        pl.BlockSpec((th_eff, D), lambda i, h: (h, 0), **w_pipeline),   # w2 slice (streamed)
        pl.BlockSpec((1, D), lambda i, h: (0, 0)),                      # b2 (tiny constant)
    ]

    scratch_shapes = [pltpu.VMEM((tm_eff, D), jnp.float32)] if use_scratch else []

    kernel = functools.partial(_mlp_kernel, compute_dtype=compute_dtype,
                               approximate_gelu=approximate_gelu)

    out = pl.pallas_call(
        kernel,
        out_shape=jax.ShapeDtypeStruct((M_pad, D), out_dtype),
        grid_spec=pltpu.PrefetchScalarGridSpec(
            num_scalar_prefetch=0,
            grid=grid,
            in_specs=in_specs,
            out_specs=pl.BlockSpec((tm_eff, D), lambda i, h: (i, 0)),
            scratch_shapes=scratch_shapes,
        ),
        compiler_params=pltpu.CompilerParams(
            dimension_semantics=("parallel", "arbitrary"),
            vmem_limit_bytes=int(vmem_limit_bytes),
        ),
        cost_estimate=cost,
    )(x2d, w1, b1_2d, w2, b2_2d)

    if M_pad != M:
        out = out[:M]
    return out.reshape(B, S, D)


def init_mlp_params(key, model_dim, expansion_rate=4, dtype=jnp.float32):
    """Deterministic init mimicking nn.Linear default (uniform +/- 1/sqrt(fan_in))."""
    hidden = model_dim * expansion_rate
    k1, k2, k3, k4 = jax.random.split(key, 4)
    bound1 = 1.0 / math.sqrt(model_dim)
    bound2 = 1.0 / math.sqrt(hidden)
    # Stored as (in_features, out_features) so the kernel does x @ W (== x @ W_torch.T).
    w1 = jax.random.uniform(k1, (model_dim, hidden), dtype, -bound1, bound1)
    b1 = jax.random.uniform(k2, (hidden,), dtype, -bound1, bound1)
    w2 = jax.random.uniform(k3, (hidden, model_dim), dtype, -bound2, bound2)
    b2 = jax.random.uniform(k4, (model_dim,), dtype, -bound2, bound2)
    return w1, b1, w2, b2


def mlp_reference(x, w1, b1, w2, b2):
    h = _gelu(x @ w1 + b1, approximate=False)
    return h @ w2 + b2


if __name__ == "__main__":
    key = jax.random.PRNGKey(0)
    k_x, k_p = jax.random.split(key)

    # Small but lane-dense shapes: D a multiple of 128 keeps output stores unmasked.
    batch, seq, model_dim = 2, 8, 128          # hidden = 512
    x = jax.random.normal(k_x, (batch, seq, model_dim), dtype=jnp.float32)
    w1, b1, w2, b2 = init_mlp_params(k_p, model_dim, expansion_rate=4)

    y_ref = mlp_reference(x, w1, b1, w2, b2)

    # Default fast path: bf16 MXU operands, f32 accumulation, tanh GELU on the EUP.
    y = jax.block_until_ready(mlp_pallas(x, w1, b1, w2, b2))
    assert y.shape == x.shape
    assert jnp.allclose(y, y_ref, atol=1e-1, rtol=1e-1), "bf16 fast path mismatch vs reference"

    # Bit-parity path: f32 operands + exact erf GELU (matches PyTorch nn.GELU()).
    y_f32 = jax.block_until_ready(
        mlp_pallas(x, w1, b1, w2, b2, compute_dtype=jnp.float32, approximate_gelu=False))
    assert jnp.allclose(y_f32, y_ref, atol=1e-5, rtol=1e-5), "f32 parity mismatch vs reference"

    print("KERNEL_OK")
</pallas_src>

<mosaic_0001>
module attributes {stable_mosaic.version = 11 : i64} {
  func.func @_mlp_kernel(%arg0: i32, %arg1: i32, %arg2: memref<16x128xbf16, #tpu.memory_space<vmem>>, %arg3: memref<128x512xbf16, #tpu.memory_space<vmem>>, %arg4: memref<1x512xf32, #tpu.memory_space<vmem>>, %arg5: memref<512x128xbf16, #tpu.memory_space<vmem>>, %arg6: memref<1x128xf32, #tpu.memory_space<vmem>>, %arg7: memref<16x128xf32, #tpu.memory_space<vmem>>) attributes {dimension_semantics = [#tpu.dimension_semantics<parallel>, #tpu.dimension_semantics<arbitrary>], iteration_bounds = array<i64: 1, 1>, scalar_prefetch = 0 : i64, scratch_operands = 0 : i64, tpu.core_type = #tpu.core_type<tc>, window_params = [{transform_indices = @transform_0, window_bounds = array<i64: 16, 128>}, {transform_indices = @transform_1, window_bounds = array<i64: 128, 512>}, {transform_indices = @transform_2, window_bounds = array<i64: 1, 512>}, {transform_indices = @transform_3, window_bounds = array<i64: 512, 128>}, {pipeline_mode = #tpu.pipeline_mode<synchronous>, transform_indices = @transform_4, window_bounds = array<i64: 1, 128>}, {transform_indices = @transform_5, window_bounds = array<i64: 16, 128>}]} {
    %c0_i32 = arith.constant 0 : i32
    %0 = arith.cmpi eq, %arg1, %c0_i32 : i32
    %1 = arith.extui %0 : i1 to i32
    %c0_i32_0 = arith.constant 0 : i32
    %2 = arith.cmpi ne, %1, %c0_i32_0 : i32
    scf.if %2 {
      %cst_19 = arith.constant 0.000000e+00 : f32
      %31 = vector.broadcast %cst_19 : f32 to vector<16x128xf32>
      %c0_20 = arith.constant 0 : index
      %c0_21 = arith.constant 0 : index
      %32 = vector.load %arg7[%c0_20, %c0_21] : memref<16x128xf32, #tpu.memory_space<vmem>>, vector<16x128xf32>
      tpu.vector_store %arg7[%c0_20, %c0_21], %31 {strides = array<i32>} : memref<16x128xf32, #tpu.memory_space<vmem>>, vector<16x128xf32>,
    } else {
    }
    %c0 = arith.constant 0 : index
    %c0_1 = arith.constant 0 : index
    %3 = vector.load %arg2[%c0, %c0_1] : memref<16x128xbf16, #tpu.memory_space<vmem>>, vector<16x128xbf16>
    %c0_2 = arith.constant 0 : index
    %c0_3 = arith.constant 0 : index
    %4 = vector.load %arg3[%c0_2, %c0_3] : memref<128x512xbf16, #tpu.memory_space<vmem>>, vector<128x512xbf16>
    %cst = arith.constant dense<0.000000e+00> : vector<16x512xf32>
    %5 = tpu.matmul %3, %4, %cst {dimension_numbers = #tpu.dot_dimension_numbers<[1], [0], [0], [1], [0, 0, 1, 1], [], []>} : vector<16x128xbf16>, vector<128x512xbf16>, vector<16x512xf32> -> vector<16x512xf32>
    %c0_4 = arith.constant 0 : index
    %c0_5 = arith.constant 0 : index
    %6 = vector.load %arg4[%c0_4, %c0_5] : memref<1x512xf32, #tpu.memory_space<vmem>>, vector<1x512xf32>
    %7 = vector.broadcast %6 : vector<1x512xf32> to vector<16x512xf32>
    %8 = arith.addf %5, %7 : vector<16x512xf32>
    %9 = arith.mulf %8, %8 : vector<16x512xf32>
    %10 = arith.mulf %8, %9 : vector<16x512xf32>
    %cst_6 = arith.constant 4.471500e-02 : f32
    %11 = vector.broadcast %cst_6 : f32 to vector<16x512xf32>
    %12 = arith.mulf %11, %10 : vector<16x512xf32>
    %13 = arith.addf %8, %12 : vector<16x512xf32>
    %cst_7 = arith.constant 0.797884583 : f32
    %14 = vector.broadcast %cst_7 : f32 to vector<16x512xf32>
    %15 = arith.mulf %14, %13 : vector<16x512xf32>
    %16 = math.tanh %15 : vector<16x512xf32>
    %cst_8 = arith.constant 1.000000e+00 : f32
    %17 = vector.broadcast %cst_8 : f32 to vector<16x512xf32>
    %18 = arith.addf %17, %16 : vector<16x512xf32>
    %cst_9 = arith.constant 5.000000e-01 : f32
    %19 = vector.broadcast %cst_9 : f32 to vector<16x512xf32>
    %20 = arith.mulf %19, %18 : vector<16x512xf32>
    %21 = arith.mulf %8, %20 : vector<16x512xf32>
    %c0_10 = arith.constant 0 : index
    %c0_11 = arith.constant 0 : index
    %22 = vector.load %arg7[%c0_10, %c0_11] : memref<16x128xf32, #tpu.memory_space<vmem>>, vector<16x128xf32>
    %23 = arith.truncf %21 : vector<16x512xf32> to vector<16x512xbf16>
    %c0_12 = arith.constant 0 : index
    %c0_13 = arith.constant 0 : index
    %24 = vector.load %arg5[%c0_12, %c0_13] : memref<512x128xbf16, #tpu.memory_space<vmem>>, vector<512x128xbf16>
    %cst_14 = arith.constant dense<0.000000e+00> : vector<16x128xf32>
    %25 = tpu.matmul %23, %24, %cst_14 {dimension_numbers = #tpu.dot_dimension_numbers<[1], [0], [0], [1], [0, 0, 1, 1], [], []>} : vector<16x512xbf16>, vector<512x128xbf16>, vector<16x128xf32> -> vector<16x128xf32>
    %26 = arith.addf %22, %25 : vector<16x128xf32>
    %c0_15 = arith.constant 0 : index
    %c0_16 = arith.constant 0 : index
    %27 = vector.load %arg7[%c0_15, %c0_16] : memref<16x128xf32, #tpu.memory_space<vmem>>, vector<16x128xf32>
    tpu.vector_store %arg7[%c0_15, %c0_16], %26 {strides = array<i32>} : memref<16x128xf32, #tpu.memory_space<vmem>>, vector<16x128xf32>,
    %c0_i32_17 = arith.constant 0 : i32
    %28 = arith.cmpi eq, %arg1, %c0_i32_17 : i32
    %29 = arith.extui %28 : i1 to i32
    %c0_i32_18 = arith.constant 0 : i32
    %30 = arith.cmpi ne, %29, %c0_i32_18 : i32
    scf.if %30 {
      %c0_19 = arith.constant 0 : index
      %c0_20 = arith.constant 0 : index
      %31 = vector.load %arg7[%c0_19, %c0_20] : memref<16x128xf32, #tpu.memory_space<vmem>>, vector<16x128xf32>
      %c0_21 = arith.constant 0 : index
      %c0_22 = arith.constant 0 : index
      %32 = vector.load %arg6[%c0_21, %c0_22] : memref<1x128xf32, #tpu.memory_space<vmem>>, vector<1x128xf32>
      %33 = vector.broadcast %32 : vector<1x128xf32> to vector<16x128xf32>
      %34 = arith.addf %31, %33 : vector<16x128xf32>
      %c0_23 = arith.constant 0 : index
      %c0_24 = arith.constant 0 : index
      %35 = vector.load %arg7[%c0_23, %c0_24] : memref<16x128xf32, #tpu.memory_space<vmem>>, vector<16x128xf32>
      tpu.vector_store %arg7[%c0_23, %c0_24], %34 {strides = array<i32>} : memref<16x128xf32, #tpu.memory_space<vmem>>, vector<16x128xf32>,
    } else {
    }
    return
  }
  func.func @transform_0(%arg0: i32, %arg1: i32) -> (i32, i32) {
    %c0_i32 = arith.constant 0 : i32
    %c0_i32_0 = arith.constant 0 : i32
    return %arg0, %c0_i32 : i32, i32
  }
  func.func @transform_1(%arg0: i32, %arg1: i32) -> (i32, i32) {
    %c0_i32 = arith.constant 0 : i32
    %c0_i32_0 = arith.constant 0 : i32
    return %c0_i32, %arg1 : i32, i32
  }
  func.func @transform_2(%arg0: i32, %arg1: i32) -> (i32, i32) {
    %c0_i32 = arith.constant 0 : i32
    %c0_i32_0 = arith.constant 0 : i32
    return %c0_i32, %arg1 : i32, i32
  }
  func.func @transform_3(%arg0: i32, %arg1: i32) -> (i32, i32) {
    %c0_i32 = arith.constant 0 : i32
    %c0_i32_0 = arith.constant 0 : i32
    return %arg1, %c0_i32 : i32, i32
  }
  func.func @transform_4(%arg0: i32, %arg1: i32) -> (i32, i32) {
    %c0_i32 = arith.constant 0 : i32
    %c0_i32_0 = arith.constant 0 : i32
    %c0_i32_1 = arith.constant 0 : i32
    return %c0_i32, %c0_i32_0 : i32, i32
  }
  func.func @transform_5(%arg0: i32, %arg1: i32) -> (i32, i32) {
    %c0_i32 = arith.constant 0 : i32
    %c0_i32_0 = arith.constant 0 : i32
    return %arg0, %c0_i32 : i32, i32
  }
}

</mosaic_0001>

<llo_original>
// kernel: tpu_custom_call.1
$region0: #{tpu_custom_call.1}
  #allocation0 [shape = 'u32[]', space=smem, size = 0x4, offset = 0x4, fixed_abs, tag = 'smem constant byte address 0x4 - core index']
  #allocation1 [shape = 'u32[144,128]{1,0:T(1,128)}', space=vmem, size = 0x12000, scoped, tag = 'internal scratch']
  %s0 = inlined_call_operand.hbm [shape: bf16[16,128], index: 0, kind: input, shape index: {}]
  %s1 = inlined_call_operand.hbm [shape: bf16[128,512], index: 1, kind: input, shape index: {}]
  %s2 = inlined_call_operand.hbm [shape: f32[1,512], index: 2, kind: input, shape index: {}]
  %s3 = inlined_call_operand.hbm [shape: bf16[512,128], index: 3, kind: input, shape index: {}]
  %s4 = inlined_call_operand.vmem [shape: f32[1,128], index: 4, kind: input, shape index: {}]
  %s5 = inlined_call_operand.hbm [shape: f32[16,128], index: 5, kind: output, shape index: {}]
  %s6 = sld [smem:[#allocation0]]
  $region54: #{tpu_custom_call.1} parent=0
    _
  %s8 = ssub.s32 1, %s6
  %s9 = scalar_select 0, %s8, %s6
  $region1: #{tpu_custom_call.1} parent=0
    #allocation2 [shape = 'u8[4096]{0}', space=vmem, size = 0x1000, scoped, tag = 'input window, operand 0, single buffered']
    #allocation3 [shape = 's32[1]{0}', space=sflag, size = 0x4, scoped, tag = 'scoped memory for tpu_custom_call.1']
    #allocation4 [shape = 's32[1]{0}', space=sflag, size = 0x4, scoped, tag = 'scoped memory for tpu_custom_call.1']
    #allocation5 [shape = 'u8[131072]{0}', space=vmem, size = 0x20000, scoped, tag = 'input window, operand 1, single buffered']
    #allocation6 [shape = 's32[1]{0}', space=sflag, size = 0x4, scoped, tag = 'scoped memory for tpu_custom_call.1']
    #allocation7 [shape = 'u8[2048]{0}', space=vmem, size = 0x800, scoped, tag = 'input window, operand 2, single buffered']
    #allocation8 [shape = 'u8[131072]{0}', space=vmem, size = 0x20000, scoped, tag = 'input window, operand 3, single buffered']
    #allocation9 [shape = 's32[1]{0}', space=sflag, size = 0x4, scoped, tag = 'scoped memory for tpu_custom_call.1']
    #allocation10 [shape = 'u8[8192]{0}', space=vmem, size = 0x2000, scoped, tag = 'output window, operand 0, single buffered']
    %10 = vsyncpa [#allocation3], 0
    %11 = vsyncpa [#allocation6], 0
    %12 = vsyncpa [#allocation9], 0
    %13 = vsyncpa [#allocation4], 0
    // Predicated region
    $region2: #{tpu_custom_call.1} parent=1 // pred_check
      _
    $region3: #{tpu_custom_call.1} parent=1 // pred_check_branch
      %15 = sbr.rel (0) target = $region5
    $region4: #{tpu_custom_call.1} parent=1 // pred_region
      %s17 = ssub.s32 128, 128
      %18 = vsyncadd [#allocation3], %s17
      %s19 = sshll.u32 [#allocation2], 4
      %s20 = int_to_ptr.vmem [resolvable:$true] %s19
      %25 = dma.hbm_to_vmem [thread:$0]  %s0, 128, %s20, [#allocation3], 64, 64, 4
    $region5: #{tpu_custom_call.1} parent=1 // pred_fallthru
      _
    // Predicated region
    $region6: #{tpu_custom_call.1} parent=1 // pred_check
      _
    $region7: #{tpu_custom_call.1} parent=1 // pred_check_branch
      %27 = sbr.rel (0) target = $region9
    $region8: #{tpu_custom_call.1} parent=1 // pred_region
      %s29 = ssub.s32 4096, 4096
      %30 = vsyncadd [#allocation6], %s29
      %s31 = sshll.u32 [#allocation5], 4
      %s32 = int_to_ptr.vmem [resolvable:$true] %s31
      %37 = dma.hbm_to_vmem [thread:$0]  %s1, 4096, %s32, [#allocation6], 256, 256, 16
    $region9: #{tpu_custom_call.1} parent=1 // pred_fallthru
      _
    // Predicated region
    $region10: #{tpu_custom_call.1} parent=1 // pred_check
      _
    $region11: #{tpu_custom_call.1} parent=1 // pred_check_branch
      %39 = sbr.rel (0) target = $region13
    $region12: #{tpu_custom_call.1} parent=1 // pred_region
      %s41 = ssub.s32 64, 64
      %42 = vsyncadd [#allocation6], %s41
      %s44 = sshll.u32 [#allocation7], 4
      %s45 = int_to_ptr.vmem [resolvable:$true] %s44
      %47 = dma.hbm_to_vmem [thread:$0]  %s2, 64, %s45, [#allocation6]
    $region13: #{tpu_custom_call.1} parent=1 // pred_fallthru
      _
    // Predicated region
    $region14: #{tpu_custom_call.1} parent=1 // pred_check
      _
    $region15: #{tpu_custom_call.1} parent=1 // pred_check_branch
      %49 = sbr.rel (0) target = $region17
    $region16: #{tpu_custom_call.1} parent=1 // pred_region
      %s51 = ssub.s32 4096, 4096
      %52 = vsyncadd [#allocation9], %s51
      %s53 = sshll.u32 [#allocation8], 4
      %s54 = int_to_ptr.vmem [resolvable:$true] %s53
      %59 = dma.hbm_to_vmem [thread:$0]  %s3, 4096, %s54, [#allocation9], 64, 64, 4
    $region17: #{tpu_custom_call.1} parent=1 // pred_fallthru
      _
    // Predicated region
    $region18: #{tpu_custom_call.1} parent=1 // pred_check
      _
    $region19: #{tpu_custom_call.1} parent=1 // pred_check_branch
      %61 = sbr.rel (0) target = $region21
    $region20: #{tpu_custom_call.1} parent=1 // pred_region
      _
    $region21: #{tpu_custom_call.1} parent=1 // pred_fallthru
      _
    // Predicated region
    $region22: #{tpu_custom_call.1} parent=1 // pred_check
      _
    $region23: #{tpu_custom_call.1} parent=1 // pred_check_branch
      %63 = sbr.rel (0) target = $region25
    $region24: #{tpu_custom_call.1} parent=1 // pred_region
      %64 = dma.done [#allocation3], 128
    $region25: #{tpu_custom_call.1} parent=1 // pred_fallthru
      _
    // Predicated region
    $region26: #{tpu_custom_call.1} parent=1 // pred_check
      _
    $region27: #{tpu_custom_call.1} parent=1 // pred_check_branch
      %66 = sbr.rel (0) target = $region29
    $region28: #{tpu_custom_call.1} parent=1 // pred_region
      %67 = dma.done [#allocation6], 4096
    $region29: #{tpu_custom_call.1} parent=1 // pred_fallthru
      _
    // Predicated region
    $region30: #{tpu_custom_call.1} parent=1 // pred_check
      _
    $region31: #{tpu_custom_call.1} parent=1 // pred_check_branch
      %69 = sbr.rel (0) target = $region33
    $region32: #{tpu_custom_call.1} parent=1 // pred_region
      %70 = dma.done [#allocation6], 64
    $region33: #{tpu_custom_call.1} parent=1 // pred_fallthru
      _
    // Predicated region
    $region34: #{tpu_custom_call.1} parent=1 // pred_check
      _
    $region35: #{tpu_custom_call.1} parent=1 // pred_check_branch
      %72 = sbr.rel (0) target = $region37
    $region36: #{tpu_custom_call.1} parent=1 // pred_region
      %73 = dma.done [#allocation9], 4096
    $region37: #{tpu_custom_call.1} parent=1 // pred_fallthru
      _
    %p75 = scmp.eq.s32.totalorder 0, 0
    // Predicated region
    $region38: #{tpu_custom_call.1} parent=1 // pred_check
      %p76 = pneg %p75
    $region39: #{tpu_custom_call.1} parent=1 // pred_check_branch
      %78 = sbr.rel (%p76) target = $region41
    $region40: #{tpu_custom_call.1} parent=1 // pred_region
      %79 = vst [vmem:[#allocation10] sm:$0xff] 0.0
      %80 = vst [vmem:[#allocation10 + $0x8] sm:$0xff] 0.0
    $region41: #{tpu_custom_call.1} parent=1 // pred_fallthru
      _
    %v81 = vld [vmem:[#allocation2] sm:$0xf]
    %v82 = vld [vmem:[#allocation2 + $0x4] sm:$0xf]
    %v83 = vld [vmem:[#allocation5] sm:$0xff]
    %v84 = vld [vmem:[#allocation5 + $0x8] sm:$0xff]
    %v85 = vld [vmem:[#allocation5 + $0x10] sm:$0xff]
    %v86 = vld [vmem:[#allocation5 + $0x18] sm:$0xff]
    %v87 = vld [vmem:[#allocation5 + $0x20] sm:$0xff]
    %v88 = vld [vmem:[#allocation5 + $0x28] sm:$0xff]
    %v89 = vld [vmem:[#allocation5 + $0x30] sm:$0xff]
    %v90 = vld [vmem:[#allocation5 + $0x38] sm:$0xff]
    %v91 = vld [vmem:[#allocation5 + $0x40] sm:$0xff]
    %v92 = vld [vmem:[#allocation5 + $0x48] sm:$0xff]
    %v93 = vld [vmem:[#allocation5 + $0x50] sm:$0xff]
    %v94 = vld [vmem:[#allocation5 + $0x58] sm:$0xff]
    %v95 = vld [vmem:[#allocation5 + $0x60] sm:$0xff]
    %v96 = vld [vmem:[#allocation5 + $0x68] sm:$0xff]
    %v97 = vld [vmem:[#allocation5 + $0x70] sm:$0xff]
    %v98 = vld [vmem:[#allocation5 + $0x78] sm:$0xff]
    %v99 = vld [vmem:[#allocation5 + $0x80] sm:$0xff]
    %v100 = vld [vmem:[#allocation5 + $0x88] sm:$0xff]
    %v101 = vld [vmem:[#allocation5 + $0x90] sm:$0xff]
    %v102 = vld [vmem:[#allocation5 + $0x98] sm:$0xff]
    %v103 = vld [vmem:[#allocation5 + $0xa0] sm:$0xff]
    %v104 = vld [vmem:[#allocation5 + $0xa8] sm:$0xff]
    %v105 = vld [vmem:[#allocation5 + $0xb0] sm:$0xff]
    %v106 = vld [vmem:[#allocation5 + $0xb8] sm:$0xff]
    %v107 = vld [vmem:[#allocation5 + $0xc0] sm:$0xff]
    %v108 = vld [vmem:[#allocation5 + $0xc8] sm:$0xff]
    %v109 = vld [vmem:[#allocation5 + $0xd0] sm:$0xff]
    %v110 = vld [vmem:[#allocation5 + $0xd8] sm:$0xff]
    %v111 = vld [vmem:[#allocation5 + $0xe0] sm:$0xff]
    %v112 = vld [vmem:[#allocation5 + $0xe8] sm:$0xff]
    %v113 = vld [vmem:[#allocation5 + $0xf0] sm:$0xff]
    %v114 = vld [vmem:[#allocation5 + $0xf8] sm:$0xff]
    %v115 = vld [vmem:[#allocation7] sm:$0xf]
    %v117 = vlaneseq
    %v118 = vshrl.u32 %v117, 7
    %v119 = vsub.s32 0, %v118
    %v120 = vrot.slane %v115, %v119
    %v121 = vlaneseq
    %v122 = vshrl.u32 %v121, 7
    %v123 = vsub.s32 1, %v122
    %v124 = vrot.slane %v115, %v123
    %v125 = vlaneseq
    %v126 = vshrl.u32 %v125, 7
    %v127 = vsub.s32 2, %v126
    %v128 = vrot.slane %v115, %v127
    %v129 = vlaneseq
    %v130 = vshrl.u32 %v129, 7
    %v131 = vsub.s32 3, %v130
    %v132 = vrot.slane %v115, %v131
    %v139 = vunpack.c.l.b16 %v81
    %v140 = vunpack.c.l.b16 %v82
    %v141 = vpack.c.b16 %v140, %v139
    %v175 = vunpack.c.l.b16 %v83
    %v176 = vunpack.c.h.b16 %v83
    %v177 = vunpack.c.l.b16 %v84
    %v178 = vunpack.c.h.b16 %v84
    %v179 = vunpack.c.l.b16 %v85
    %v180 = vunpack.c.h.b16 %v85
    %v181 = vunpack.c.l.b16 %v86
    %v182 = vunpack.c.h.b16 %v86
    %v183 = vunpack.c.l.b16 %v87
    %v184 = vunpack.c.h.b16 %v87
    %v185 = vunpack.c.l.b16 %v88
    %v186 = vunpack.c.h.b16 %v88
    %v187 = vunpack.c.l.b16 %v89
    %v188 = vunpack.c.h.b16 %v89
    %v189 = vunpack.c.l.b16 %v90
    %v190 = vunpack.c.h.b16 %v90
    %v191 = vunpack.c.l.b16 %v91
    %v192 = vunpack.c.h.b16 %v91
    %v193 = vunpack.c.l.b16 %v92
    %v194 = vunpack.c.h.b16 %v92
    %v195 = vunpack.c.l.b16 %v93
    %v196 = vunpack.c.h.b16 %v93
    %v197 = vunpack.c.l.b16 %v94
    %v198 = vunpack.c.h.b16 %v94
    %v199 = vunpack.c.l.b16 %v95
    %v200 = vunpack.c.h.b16 %v95
    %v201 = vunpack.c.l.b16 %v96
    %v202 = vunpack.c.h.b16 %v96
    %v203 = vunpack.c.l.b16 %v97
    %v204 = vunpack.c.h.b16 %v97
    %v205 = vunpack.c.l.b16 %v98
    %v206 = vunpack.c.h.b16 %v98
    %v207 = vunpack.c.l.b16 %v99
    %v208 = vunpack.c.h.b16 %v99
    %v209 = vunpack.c.l.b16 %v100
    %v210 = vunpack.c.h.b16 %v100
    %v211 = vunpack.c.l.b16 %v101
    %v212 = vunpack.c.h.b16 %v101
    %v213 = vunpack.c.l.b16 %v102
    %v214 = vunpack.c.h.b16 %v102
    %v215 = vunpack.c.l.b16 %v103
    %v216 = vunpack.c.h.b16 %v103
    %v217 = vunpack.c.l.b16 %v104
    %v218 = vunpack.c.h.b16 %v104
    %v219 = vunpack.c.l.b16 %v105
    %v220 = vunpack.c.h.b16 %v105
    %v221 = vunpack.c.l.b16 %v106
    %v222 = vunpack.c.h.b16 %v106
    %v223 = vunpack.c.l.b16 %v107
    %v224 = vunpack.c.h.b16 %v107
    %v225 = vunpack.c.l.b16 %v108
    %v226 = vunpack.c.h.b16 %v108
    %v227 = vunpack.c.l.b16 %v109
    %v228 = vunpack.c.h.b16 %v109
    %v229 = vunpack.c.l.b16 %v110
    %v230 = vunpack.c.h.b16 %v110
    %v231 = vunpack.c.l.b16 %v111
    %v232 = vunpack.c.h.b16 %v111
    %v233 = vunpack.c.l.b16 %v112
    %v234 = vunpack.c.h.b16 %v112
    %v235 = vunpack.c.l.b16 %v113
    %v236 = vunpack.c.h.b16 %v113
    %v237 = vunpack.c.l.b16 %v114
    %v238 = vunpack.c.h.b16 %v114
    %v239 = vpack.c.b16 %v179, %v175
    %v240 = vpack.c.b16 %v180, %v176
    %v241 = vpack.c.b16 %v181, %v177
    %v242 = vpack.c.b16 %v182, %v178
    %v243 = vpack.c.b16 %v187, %v183
    %v244 = vpack.c.b16 %v188, %v184
    %v245 = vpack.c.b16 %v189, %v185
    %v246 = vpack.c.b16 %v190, %v186
    %v247 = vpack.c.b16 %v195, %v191
    %v248 = vpack.c.b16 %v196, %v192
    %v249 = vpack.c.b16 %v197, %v193
    %v250 = vpack.c.b16 %v198, %v194
    %v251 = vpack.c.b16 %v203, %v199
    %v252 = vpack.c.b16 %v204, %v200
    %v253 = vpack.c.b16 %v205, %v201
    %v254 = vpack.c.b16 %v206, %v202
    %v255 = vpack.c.b16 %v211, %v207
    %v256 = vpack.c.b16 %v212, %v208
    %v257 = vpack.c.b16 %v213, %v209
    %v258 = vpack.c.b16 %v214, %v210
    %v259 = vpack.c.b16 %v219, %v215
    %v260 = vpack.c.b16 %v220, %v216
    %v261 = vpack.c.b16 %v221, %v217
    %v262 = vpack.c.b16 %v222, %v218
    %v263 = vpack.c.b16 %v227, %v223
    %v264 = vpack.c.b16 %v228, %v224
    %v265 = vpack.c.b16 %v229, %v225
    %v266 = vpack.c.b16 %v230, %v226
    %v267 = vpack.c.b16 %v235, %v231
    %v268 = vpack.c.b16 %v236, %v232
    %v269 = vpack.c.b16 %v237, %v233
    %v270 = vpack.c.b16 %v238, %v234
    %303 = vmatprep.subr.bf16.mxu0 %v268
    %304 = vmatpush1.bf16.msra.mxu0 %v267
    %305 = vmatprep.subr.bf16.mxu0 %v264
    %306 = vmatpush1.bf16.msra.mxu0 %v263
    %307 = vmatprep.subr.bf16.mxu0 %v260
    %308 = vmatpush1.bf16.msra.mxu0 %v259
    %309 = vmatprep.subr.bf16.mxu0 %v256
    %310 = vmatpush1.bf16.msra.mxu0 %v255
    %311 = vmatprep.subr.bf16.mxu0 %v252
    %312 = vmatpush1.bf16.msra.mxu0 %v251
    %313 = vmatprep.subr.bf16.mxu0 %v248
    %314 = vmatpush1.bf16.msra.mxu0 %v247
    %315 = vmatprep.subr.bf16.mxu0 %v244
    %316 = vmatpush1.bf16.msra.mxu0 %v243
    %317 = vmatprep.subr.bf16.mxu0 %v240
    %318 = vmatpush1.bf16.msra.mxu0 %v239
    %319 = vmatprep.subr.bf16.mxu0 0
    %320 = vmatpush2.bf16.msra.mxu0 0
    %321 = vmatprep.subr.bf16.mxu0 0
    %322 = vmatpush2.bf16.msra.mxu0 0
    %323 = vmatprep.subr.bf16.mxu0 0
    %324 = vmatpush2.bf16.msra.mxu0 0
    %325 = vmatprep.subr.bf16.mxu0 0
    %326 = vmatpush2.bf16.msra.mxu0 0
    %327 = vmatprep.subr.bf16.mxu0 0
    %328 = vmatpush2.bf16.msra.mxu0 0
    %329 = vmatprep.subr.bf16.mxu0 0
    %330 = vmatpush2.bf16.msra.mxu0 0
    %331 = vmatprep.subr.bf16.mxu0 0
    %332 = vmatpush2.bf16.msra.mxu0 0
    %333 = vmatprep.subr.bf16.mxu0 0
    %334 = vmatpush2.bf16.msra.mxu0 0
    %335 = vmatprep.mubr.bf16.mxu0 0
    %336 = vmatmul.mubr.bf16.gmra.mxu0 %v141
    %v337 = vpop.f32.mrf.mxu0
    %v338 = vadd.f32 %v120, %v337
    %v339 = vpop.f32.mrf.mxu0
    %v340 = vadd.f32 %v124, %v339
    %v341 = vpop.f32.mrf.mxu0
    %v342 = vadd.f32 %v120, %v341
    %v343 = vpop.f32.mrf.mxu0
    %v344 = vadd.f32 %v124, %v343
    %345 = vdwg.mxu0
    %346 = vmatprep.subr.bf16.mxu0 %v270
    %347 = vmatpush1.bf16.msra.mxu0 %v269
    %348 = vmatprep.subr.bf16.mxu0 %v266
    %349 = vmatpush1.bf16.msra.mxu0 %v265
    %350 = vmatprep.subr.bf16.mxu0 %v262
    %351 = vmatpush1.bf16.msra.mxu0 %v261
    %352 = vmatprep.subr.bf16.mxu0 %v258
    %353 = vmatpush1.bf16.msra.mxu0 %v257
    %354 = vmatprep.subr.bf16.mxu0 %v254
    %355 = vmatpush1.bf16.msra.mxu0 %v253
    %356 = vmatprep.subr.bf16.mxu0 %v250
    %357 = vmatpush1.bf16.msra.mxu0 %v249
    %358 = vmatprep.subr.bf16.mxu0 %v246
    %359 = vmatpush1.bf16.msra.mxu0 %v245
    %360 = vmatprep.subr.bf16.mxu0 %v242
    %361 = vmatpush1.bf16.msra.mxu0 %v241
    %362 = vmatprep.subr.bf16.mxu0 0
    %363 = vmatpush2.bf16.msra.mxu0 0
    %364 = vmatprep.subr.bf16.mxu0 0
    %365 = vmatpush2.bf16.msra.mxu0 0
    %366 = vmatprep.subr.bf16.mxu0 0
    %367 = vmatpush2.bf16.msra.mxu0 0
    %368 = vmatprep.subr.bf16.mxu0 0
    %369 = vmatpush2.bf16.msra.mxu0 0
    %370 = vmatprep.subr.bf16.mxu0 0
    %371 = vmatpush2.bf16.msra.mxu0 0
    %372 = vmatprep.subr.bf16.mxu0 0
    %373 = vmatpush2.bf16.msra.mxu0 0
    %374 = vmatprep.subr.bf16.mxu0 0
    %375 = vmatpush2.bf16.msra.mxu0 0
    %376 = vmatprep.subr.bf16.mxu0 0
    %377 = vmatpush2.bf16.msra.mxu0 0
    %378 = vmatprep.mubr.bf16.mxu0 0
    %379 = vmatmul.mubr.bf16.gmra.mxu0 %v141
    %v380 = vpop.f32.mrf.mxu0
    %v381 = vadd.f32 %v128, %v380
    %v382 = vpop.f32.mrf.mxu0
    %v383 = vadd.f32 %v132, %v382
    %v384 = vpop.f32.mrf.mxu0
    %v385 = vadd.f32 %v128, %v384
    %v386 = vpop.f32.mrf.mxu0
    %v387 = vadd.f32 %v132, %v386
    %388 = vdwg.mxu0
    %v389 = vmul.f32 %v338, %v338
    %v390 = vmul.f32 %v340, %v340
    %v391 = vmul.f32 %v381, %v381
    %v392 = vmul.f32 %v383, %v383
    %v393 = vmul.f32 %v342, %v342
    %v394 = vmul.f32 %v344, %v344
    %v395 = vmul.f32 %v385, %v385
    %v396 = vmul.f32 %v387, %v387
    %v397 = vmul.f32 %v338, %v389
    %v398 = vmul.f32 %v340, %v390
    %v399 = vmul.f32 %v381, %v391
    %v400 = vmul.f32 %v383, %v392
    %v401 = vmul.f32 %v342, %v393
    %v402 = vmul.f32 %v344, %v394
    %v403 = vmul.f32 %v385, %v395
    %v404 = vmul.f32 %v387, %v396
    %v405 = vmul.f32 %v397, 0.044715
    %v406 = vmul.f32 %v398, 0.044715
    %v407 = vmul.f32 %v399, 0.044715
    %v408 = vmul.f32 %v400, 0.044715
    %v409 = vmul.f32 %v401, 0.044715
    %v410 = vmul.f32 %v402, 0.044715
    %v411 = vmul.f32 %v403, 0.044715
    %v412 = vmul.f32 %v404, 0.044715
    %v413 = vadd.f32 %v338, %v405
    %v414 = vadd.f32 %v340, %v406
    %v415 = vadd.f32 %v381, %v407
    %v416 = vadd.f32 %v383, %v408
    %v417 = vadd.f32 %v342, %v409
    %v418 = vadd.f32 %v344, %v410
    %v419 = vadd.f32 %v385, %v411
    %v420 = vadd.f32 %v387, %v412
    %v421 = vmul.f32 %v413, 0.7978846
    %v422 = vmul.f32 %v414, 0.7978846
    %v423 = vmul.f32 %v415, 0.7978846
    %v424 = vmul.f32 %v416, 0.7978846
    %v425 = vmul.f32 %v417, 0.7978846
    %v426 = vmul.f32 %v418, 0.7978846
    %v427 = vmul.f32 %v419, 0.7978846
    %v428 = vmul.f32 %v420, 0.7978846
    %v429 = vtanh.pop %v421
    %v430 = vtanh.pop %v422
    %v431 = vtanh.pop %v423
    %v432 = vtanh.pop %v424
    %v433 = vtanh.pop %v425
    %v434 = vtanh.pop %v426
    %v435 = vtanh.pop %v427
    %v436 = vtanh.pop %v428
    %v437 = vadd.f32 %v429, 1.0
    %v438 = vadd.f32 %v430, 1.0
    %v439 = vadd.f32 %v431, 1.0
    %v440 = vadd.f32 %v432, 1.0
    %v441 = vadd.f32 %v433, 1.0
    %v442 = vadd.f32 %v434, 1.0
    %v443 = vadd.f32 %v435, 1.0
    %v444 = vadd.f32 %v436, 1.0
    %v445 = vmul.f32 %v437, 0.5
    %v446 = vmul.f32 %v438, 0.5
    %v447 = vmul.f32 %v439, 0.5
    %v448 = vmul.f32 %v440, 0.5
    %v449 = vmul.f32 %v441, 0.5
    %v450 = vmul.f32 %v442, 0.5
    %v451 = vmul.f32 %v443, 0.5
    %v452 = vmul.f32 %v444, 0.5
    %v453 = vmul.f32 %v338, %v445
    %v454 = vmul.f32 %v340, %v446
    %v455 = vmul.f32 %v381, %v447
    %v456 = vmul.f32 %v383, %v448
    %v457 = vmul.f32 %v342, %v449
    %v458 = vmul.f32 %v344, %v450
    %v459 = vmul.f32 %v385, %v451
    %v460 = vmul.f32 %v387, %v452
    %v461 = vld [vmem:[#allocation10] sm:$0xff]
    %v462 = vld [vmem:[#allocation10 + $0x8] sm:$0xff]
    %v463 = vpack.c.bf16 %v457, %v453
    %v464 = vpack.c.bf16 %v458, %v454
    %v465 = vpack.c.bf16 %v459, %v455
    %v466 = vpack.c.bf16 %v460, %v456
    %v467 = vld [vmem:[#allocation8] sm:$0xf]
    %v468 = vld [vmem:[#allocation8 + $0x4] sm:$0xf]
    %v469 = vld [vmem:[#allocation8 + $0x8] sm:$0xf]
    %v470 = vld [vmem:[#allocation8 + $0xc] sm:$0xf]
    %v471 = vld [vmem:[#allocation8 + $0x10] sm:$0xf]
    %v472 = vld [vmem:[#allocation8 + $0x14] sm:$0xf]
    %v473 = vld [vmem:[#allocation8 + $0x18] sm:$0xf]
    %v474 = vld [vmem:[#allocation8 + $0x1c] sm:$0xf]
    %v475 = vld [vmem:[#allocation8 + $0x20] sm:$0xf]
    %v476 = vld [vmem:[#allocation8 + $0x24] sm:$0xf]
    %v477 = vld [vmem:[#allocation8 + $0x28] sm:$0xf]
    %v478 = vld [vmem:[#allocation8 + $0x2c] sm:$0xf]
    %v479 = vld [vmem:[#allocation8 + $0x30] sm:$0xf]
    %v480 = vld [vmem:[#allocation8 + $0x34] sm:$0xf]
    %v481 = vld [vmem:[#allocation8 + $0x38] sm:$0xf]
    %v482 = vld [vmem:[#allocation8 + $0x3c] sm:$0xf]
    %v483 = vld [vmem:[#allocation8 + $0x40] sm:$0xf]
    %v484 = vld [vmem:[#allocation8 + $0x44] sm:$0xf]
    %v485 = vld [vmem:[#allocation8 + $0x48] sm:$0xf]
    %v486 = vld [vmem:[#allocation8 + $0x4c] sm:$0xf]
    %v487 = vld [vmem:[#allocation8 + $0x50] sm:$0xf]
    %v488 = vld [vmem:[#allocation8 + $0x54] sm:$0xf]
    %v489 = vld [vmem:[#allocation8 + $0x58] sm:$0xf]
    %v490 = vld [vmem:[#allocation8 + $0x5c] sm:$0xf]
    %v491 = vld [vmem:[#allocation8 + $0x60] sm:$0xf]
    %v492 = vld [vmem:[#allocation8 + $0x64] sm:$0xf]
    %v493 = vld [vmem:[#allocation8 + $0x68] sm:$0xf]
    %v494 = vld [vmem:[#allocation8 + $0x6c] sm:$0xf]
    %v495 = vld [vmem:[#allocation8 + $0x70] sm:$0xf]
    %v496 = vld [vmem:[#allocation8 + $0x74] sm:$0xf]
    %v497 = vld [vmem:[#allocation8 + $0x78] sm:$0xf]
    %v498 = vld [vmem:[#allocation8 + $0x7c] sm:$0xf]
    %v499 = vld [vmem:[#allocation8 + $0x80] sm:$0xf]
    %v500 = vld [vmem:[#allocation8 + $0x84] sm:$0xf]
    %v501 = vld [vmem:[#allocation8 + $0x88] sm:$0xf]
    %v502 = vld [vmem:[#allocation8 + $0x8c] sm:$0xf]
    %v503 = vld [vmem:[#allocation8 + $0x90] sm:$0xf]
    %v504 = vld [vmem:[#allocation8 + $0x94] sm:$0xf]
    %v505 = vld [vmem:[#allocation8 + $0x98] sm:$0xf]
    %v506 = vld [vmem:[#allocation8 + $0x9c] sm:$0xf]
    %v507 = vld [vmem:[#allocation8 + $0xa0] sm:$0xf]
    %v508 = vld [vmem:[#allocation8 + $0xa4] sm:$0xf]
    %v509 = vld [vmem:[#allocation8 + $0xa8] sm:$0xf]
    %v510 = vld [vmem:[#allocation8 + $0xac] sm:$0xf]
    %v511 = vld [vmem:[#allocation8 + $0xb0] sm:$0xf]
    %v512 = vld [vmem:[#allocation8 + $0xb4] sm:$0xf]
    %v513 = vld [vmem:[#allocation8 + $0xb8] sm:$0xf]
    %v514 = vld [vmem:[#allocation8 + $0xbc] sm:$0xf]
    %v515 = vld [vmem:[#allocation8 + $0xc0] sm:$0xf]
    %v516 = vld [vmem:[#allocation8 + $0xc4] sm:$0xf]
    %v517 = vld [vmem:[#allocation8 + $0xc8] sm:$0xf]
    %v518 = vld [vmem:[#allocation8 + $0xcc] sm:$0xf]
    %v519 = vld [vmem:[#allocation8 + $0xd0] sm:$0xf]
    %v520 = vld [vmem:[#allocation8 + $0xd4] sm:$0xf]
    %v521 = vld [vmem:[#allocation8 + $0xd8] sm:$0xf]
    %v522 = vld [vmem:[#allocation8 + $0xdc] sm:$0xf]
    %v523 = vld [vmem:[#allocation8 + $0xe0] sm:$0xf]
    %v524 = vld [vmem:[#allocation8 + $0xe4] sm:$0xf]
    %v525 = vld [vmem:[#allocation8 + $0xe8] sm:$0xf]
    %v526 = vld [vmem:[#allocation8 + $0xec] sm:$0xf]
    %v527 = vld [vmem:[#allocation8 + $0xf0] sm:$0xf]
    %v528 = vld [vmem:[#allocation8 + $0xf4] sm:$0xf]
    %v529 = vld [vmem:[#allocation8 + $0xf8] sm:$0xf]
    %v530 = vld [vmem:[#allocation8 + $0xfc] sm:$0xf]
    %v595 = vunpack.c.l.b16 %v467
    %v596 = vunpack.c.l.b16 %v468
    %v597 = vunpack.c.l.b16 %v469
    %v598 = vunpack.c.l.b16 %v470
    %v599 = vunpack.c.l.b16 %v471
    %v600 = vunpack.c.l.b16 %v472
    %v601 = vunpack.c.l.b16 %v473
    %v602 = vunpack.c.l.b16 %v474
    %v603 = vunpack.c.l.b16 %v475
    %v604 = vunpack.c.l.b16 %v476
    %v605 = vunpack.c.l.b16 %v477
    %v606 = vunpack.c.l.b16 %v478
    %v607 = vunpack.c.l.b16 %v479
    %v608 = vunpack.c.l.b16 %v480
    %v609 = vunpack.c.l.b16 %v481
    %v610 = vunpack.c.l.b16 %v482
    %v611 = vunpack.c.l.b16 %v483
    %v612 = vunpack.c.l.b16 %v484
    %v613 = vunpack.c.l.b16 %v485
    %v614 = vunpack.c.l.b16 %v486
    %v615 = vunpack.c.l.b16 %v487
    %v616 = vunpack.c.l.b16 %v488
    %v617 = vunpack.c.l.b16 %v489
    %v618 = vunpack.c.l.b16 %v490
    %v619 = vunpack.c.l.b16 %v491
    %v620 = vunpack.c.l.b16 %v492
    %v621 = vunpack.c.l.b16 %v493
    %v622 = vunpack.c.l.b16 %v494
    %v623 = vunpack.c.l.b16 %v495
    %v624 = vunpack.c.l.b16 %v496
    %v625 = vunpack.c.l.b16 %v497
    %v626 = vunpack.c.l.b16 %v498
    %v627 = vunpack.c.l.b16 %v499
    %v628 = vunpack.c.l.b16 %v500
    %v629 = vunpack.c.l.b16 %v501
    %v630 = vunpack.c.l.b16 %v502
    %v631 = vunpack.c.l.b16 %v503
    %v632 = vunpack.c.l.b16 %v504
    %v633 = vunpack.c.l.b16 %v505
    %v634 = vunpack.c.l.b16 %v506
    %v635 = vunpack.c.l.b16 %v507
    %v636 = vunpack.c.l.b16 %v508
    %v637 = vunpack.c.l.b16 %v509
    %v638 = vunpack.c.l.b16 %v510
    %v639 = vunpack.c.l.b16 %v511
    %v640 = vunpack.c.l.b16 %v512
    %v641 = vunpack.c.l.b16 %v513
    %v642 = vunpack.c.l.b16 %v514
    %v643 = vunpack.c.l.b16 %v515
    %v644 = vunpack.c.l.b16 %v516
    %v645 = vunpack.c.l.b16 %v517
    %v646 = vunpack.c.l.b16 %v518
    %v647 = vunpack.c.l.b16 %v519
    %v648 = vunpack.c.l.b16 %v520
    %v649 = vunpack.c.l.b16 %v521
    %v650 = vunpack.c.l.b16 %v522
    %v651 = vunpack.c.l.b16 %v523
    %v652 = vunpack.c.l.b16 %v524
    %v653 = vunpack.c.l.b16 %v525
    %v654 = vunpack.c.l.b16 %v526
    %v655 = vunpack.c.l.b16 %v527
    %v656 = vunpack.c.l.b16 %v528
    %v657 = vunpack.c.l.b16 %v529
    %v658 = vunpack.c.l.b16 %v530
    %v659 = vpack.c.b16 %v596, %v595
    %v660 = vpack.c.b16 %v598, %v597
    %v661 = vpack.c.b16 %v600, %v599
    %v662 = vpack.c.b16 %v602, %v601
    %v663 = vpack.c.b16 %v604, %v603
    %v664 = vpack.c.b16 %v606, %v605
    %v665 = vpack.c.b16 %v608, %v607
    %v666 = vpack.c.b16 %v610, %v609
    %v667 = vpack.c.b16 %v612, %v611
    %v668 = vpack.c.b16 %v614, %v613
    %v669 = vpack.c.b16 %v616, %v615
    %v670 = vpack.c.b16 %v618, %v617
    %v671 = vpack.c.b16 %v620, %v619
    %v672 = vpack.c.b16 %v622, %v621
    %v673 = vpack.c.b16 %v624, %v623
    %v674 = vpack.c.b16 %v626, %v625
    %v675 = vpack.c.b16 %v628, %v627
    %v676 = vpack.c.b16 %v630, %v629
    %v677 = vpack.c.b16 %v632, %v631
    %v678 = vpack.c.b16 %v634, %v633
    %v679 = vpack.c.b16 %v636, %v635
    %v680 = vpack.c.b16 %v638, %v637
    %v681 = vpack.c.b16 %v640, %v639
    %v682 = vpack.c.b16 %v642, %v641
    %v683 = vpack.c.b16 %v644, %v643
    %v684 = vpack.c.b16 %v646, %v645
    %v685 = vpack.c.b16 %v648, %v647
    %v686 = vpack.c.b16 %v650, %v649
    %v687 = vpack.c.b16 %v652, %v651
    %v688 = vpack.c.b16 %v654, %v653
    %v689 = vpack.c.b16 %v656, %v655
    %v690 = vpack.c.b16 %v658, %v657
    %723 = vmatprep.subr.bf16.mxu0 0
    %724 = vmatpush1.bf16.msra.mxu0 %v666
    %725 = vmatprep.subr.bf16.mxu0 0
    %726 = vmatpush1.bf16.msra.mxu0 %v665
    %727 = vmatprep.subr.bf16.mxu0 0
    %728 = vmatpush1.bf16.msra.mxu0 %v664
    %729 = vmatprep.subr.bf16.mxu0 0
    %730 = vmatpush1.bf16.msra.mxu0 %v663
    %731 = vmatprep.subr.bf16.mxu0 0
    %732 = vmatpush1.bf16.msra.mxu0 %v662
    %733 = vmatprep.subr.bf16.mxu0 0
    %734 = vmatpush1.bf16.msra.mxu0 %v661
    %735 = vmatprep.subr.bf16.mxu0 0
    %736 = vmatpush1.bf16.msra.mxu0 %v660
    %737 = vmatprep.subr.bf16.mxu0 0
    %738 = vmatpush1.bf16.msra.mxu0 %v659
    %739 = vmatprep.subr.bf16.mxu0 0
    %740 = vmatpush2.bf16.msra.mxu0 %v674
    %741 = vmatprep.subr.bf16.mxu0 0
    %742 = vmatpush2.bf16.msra.mxu0 %v673
    %743 = vmatprep.subr.bf16.mxu0 0
    %744 = vmatpush2.bf16.msra.mxu0 %v672
    %745 = vmatprep.subr.bf16.mxu0 0
    %746 = vmatpush2.bf16.msra.mxu0 %v671
    %747 = vmatprep.subr.bf16.mxu0 0
    %748 = vmatpush2.bf16.msra.mxu0 %v670
    %749 = vmatprep.subr.bf16.mxu0 0
    %750 = vmatpush2.bf16.msra.mxu0 %v669
    %751 = vmatprep.subr.bf16.mxu0 0
    %752 = vmatpush2.bf16.msra.mxu0 %v668
    %753 = vmatprep.subr.bf16.mxu0 0
    %754 = vmatpush2.bf16.msra.mxu0 %v667
    %755 = vmatprep.mubr.bf16.mxu0 %v464
    %756 = vmatmul.mubr.bf16.gmra.mxu0 %v463
    %v757 = vpop.f32.mrf.mxu0
    %v758 = vadd.f32 0.0, %v757
    %v759 = vpop.f32.mrf.mxu0
    %v760 = vpop.f32.mrf.mxu0
    %v761 = vadd.f32 0.0, %v760
    %v762 = vpop.f32.mrf.mxu0
    %763 = vdwg.mxu0
    %764 = vmatprep.subr.bf16.mxu0 0
    %765 = vmatpush1.bf16.msra.mxu0 %v682
    %766 = vmatprep.subr.bf16.mxu0 0
    %767 = vmatpush1.bf16.msra.mxu0 %v681
    %768 = vmatprep.subr.bf16.mxu0 0
    %769 = vmatpush1.bf16.msra.mxu0 %v680
    %770 = vmatprep.subr.bf16.mxu0 0
    %771 = vmatpush1.bf16.msra.mxu0 %v679
    %772 = vmatprep.subr.bf16.mxu0 0
    %773 = vmatpush1.bf16.msra.mxu0 %v678
    %774 = vmatprep.subr.bf16.mxu0 0
    %775 = vmatpush1.bf16.msra.mxu0 %v677
    %776 = vmatprep.subr.bf16.mxu0 0
    %777 = vmatpush1.bf16.msra.mxu0 %v676
    %778 = vmatprep.subr.bf16.mxu0 0
    %779 = vmatpush1.bf16.msra.mxu0 %v675
    %780 = vmatprep.subr.bf16.mxu0 0
    %781 = vmatpush2.bf16.msra.mxu0 %v690
    %782 = vmatprep.subr.bf16.mxu0 0
    %783 = vmatpush2.bf16.msra.mxu0 %v689
    %784 = vmatprep.subr.bf16.mxu0 0
    %785 = vmatpush2.bf16.msra.mxu0 %v688
    %786 = vmatprep.subr.bf16.mxu0 0
    %787 = vmatpush2.bf16.msra.mxu0 %v687
    %788 = vmatprep.subr.bf16.mxu0 0
    %789 = vmatpush2.bf16.msra.mxu0 %v686
    %790 = vmatprep.subr.bf16.mxu0 0
    %791 = vmatpush2.bf16.msra.mxu0 %v685
    %792 = vmatprep.subr.bf16.mxu0 0
    %793 = vmatpush2.bf16.msra.mxu0 %v684
    %794 = vmatprep.subr.bf16.mxu0 0
    %795 = vmatpush2.bf16.msra.mxu0 %v683
    %796 = vmatprep.mubr.bf16.mxu0 %v466
    %797 = vmatmul.mubr.bf16.gmra.mxu0 %v465
    %v798 = vpop.f32.mrf.mxu0
    %v799 = vadd.f32 %v758, %v798
    %v800 = vpop.f32.mrf.mxu0
    %v801 = vpop.f32.mrf.mxu0
    %v802 = vadd.f32 %v761, %v801
    %v803 = vpop.f32.mrf.mxu0
    %804 = vdwg.mxu0
    %v805 = vadd.f32 %v461, %v799
    %v806 = vadd.f32 %v462, %v802
    %807 = vst [vmem:[#allocation10] sm:$0xff] %v805
    %808 = vst [vmem:[#allocation10 + $0x8] sm:$0xff] %v806
    // Predicated region
    $region42: #{tpu_custom_call.1} parent=1 // pred_check
      %p809 = pneg %p75
    $region43: #{tpu_custom_call.1} parent=1 // pred_check_branch
      %811 = sbr.rel (%p809) target = $region45
    $region44: #{tpu_custom_call.1} parent=1 // pred_region
      %v812 = vld [vmem:[#allocation10] sm:$0xff]
      %v813 = vld [vmem:[#allocation10 + $0x8] sm:$0xff]
      %v814 = vld [vmem:[%s4] sm:$0x1]
      %v816 = vlaneseq
      %v817 = vshrl.u32 %v816, 7
      %v818 = vsub.s32 0, %v817
      %v819 = vrot.slane %v814, %v818
      %v821 = vadd.f32 %v812, %v819
      %v822 = vadd.f32 %v813, %v819
      %823 = vst [vmem:[#allocation10] sm:$0xff] %v821
      %824 = vst [vmem:[#allocation10 + $0x8] sm:$0xff] %v822
    $region45: #{tpu_custom_call.1} parent=1 // pred_fallthru
      _
    // Predicated region
    $region46: #{tpu_custom_call.1} parent=1 // pred_check
      _
    $region47: #{tpu_custom_call.1} parent=1 // pred_check_branch
      %826 = sbr.rel (0) target = $region49
    $region48: #{tpu_custom_call.1} parent=1 // pred_region
      %s828 = ssub.s32 256, 256
      %829 = vsyncadd [#allocation4], %s828
      %s830 = sshll.u32 [#allocation10], 4
      %s831 = int_to_ptr.vmem [resolvable:$true] %s830
      %836 = dma.vmem_to_hbm [thread:$0]  %s831, 256, %s5, [#allocation4], 128, 128, 8
    $region49: #{tpu_custom_call.1} parent=1 // pred_fallthru
      _
    // Predicated region
    $region50: #{tpu_custom_call.1} parent=1 // pred_check
      _
    $region51: #{tpu_custom_call.1} parent=1 // pred_check_branch
      %838 = sbr.rel (0) target = $region53
    $region52: #{tpu_custom_call.1} parent=1 // pred_region
      %839 = dma.done [#allocation4], 256
    $region53: #{tpu_custom_call.1} parent=1 // pred_fallthru
      _
    %840 = vsyncpa [#allocation3], 1
    %841 = vsyncpa [#allocation6], 1
    %842 = vsyncpa [#allocation9], 1
    %843 = vsyncpa [#allocation4], 1

</llo_original>
